<compile_context>
chip_gen: v6e
topology: v6e:2x2x1
jax: 0.10.0
libtpu: 0.0.40
codegen_flags: <defaults>
</compile_context>

<pallas_src>
import functools

import jax
import jax.numpy as jnp
from jax import lax
from jax.experimental import pallas as pl
from jax.experimental.pallas import tpu as pltpu


def _round_up(x, m):
    return (x + m - 1) // m * m


def _vmem_cap_bytes():
    """~80% of physical per-core VMEM, leaving headroom for compiler scratch."""
    try:
        phys = int(pltpu.get_tpu_info().vmem_capacity_bytes)
    except Exception:
        phys = 64 * 1024 * 1024   # conservative fallback (v7x per-TC size)
    return int(phys * 0.8)


def _vmem_needed_bytes(block_m, embed_dim, vocab, probs_itemsize):
    x_tile = 2 * block_m * embed_dim * 2              # double-buffered bf16 X tile
    w_full = vocab * embed_dim * 2                    # single-buffered bf16 table
    preds = 2 * block_m * 128 * 4                     # (bm,1) i32, lane-padded, 2 bufs
    probs = 2 * block_m * vocab * probs_itemsize      # double-buffered probs out tile
    return x_tile + w_full + preds + probs


def _embeddings_kernel(x_ref, w_ref, pred_ref, probs_ref, *, inv_temperature):
    x = x_ref[...]                                    # (bm, E) bf16
    w = w_ref[...]                                    # (V,  E) bf16

    # --- scores (dot metric): X @ W.T on the MXU, W consumed in stored (V, E) layout ---
    logits = lax.dot_general(
        x, w,
        dimension_numbers=(((1,), (1,)), ((), ())),
        preferred_element_type=jnp.float32)           # (bm, V) f32 accumulation
    scaled = logits * inv_temperature

    # --- softmax over vocab (lane axis); reciprocal on the EUP slot ---
    row_max = jnp.max(scaled, axis=-1, keepdims=True)
    e = jnp.exp(scaled - row_max)
    denom = jnp.sum(e, axis=-1, keepdims=True)
    probs = e * pl.reciprocal(denom, approx=True)

    # --- argmax on pre-softmax logits (softmax is monotone -> identical result),
    #     first maximal index on ties, reusing row_max (no extra XLU reduce) ---
    vocab = scaled.shape[-1]
    col_ids = lax.broadcasted_iota(jnp.int32, scaled.shape, 1)
    idx = jnp.min(jnp.where(scaled == row_max, col_ids, vocab),
                  axis=-1, keepdims=True)             # (bm, 1) i32

    # preds traffic is negligible vs the probs stream, so the known-good (bm, 1)
    # store layout is kept rather than a lane-dense relayout.
    pred_ref[...] = idx
    probs_ref[...] = probs.astype(probs_ref.dtype)


def embeddings_forward(pred_embeds, embed_weight, *, temperature=0.1,
                       block_m=512, probs_dtype=jnp.float32):
    """pred_embeds: (B, S, E) f32; embed_weight: (V, E) f32.

    Returns ((pred_embeds_st, pred_embeds_param), predictions,
             (pred_probs_st, softmax_pred_probs)) mirroring the PyTorch module.
    """
    B, S, E = pred_embeds.shape
    V = embed_weight.shape[0]
    M = B * S
    probs_itemsize = jnp.dtype(probs_dtype).itemsize

    # --- adaptive row tile ---------------------------------------------------
    # bf16 rows pack 16 per sublane-vreg -> round to multiples of 16.
    block_m = max(16, min(block_m, _round_up(M, 16)))
    vmem_cap = _vmem_cap_bytes()
    while (block_m > 16 and
           int(1.25 * _vmem_needed_bytes(block_m, E, V, probs_itemsize)) > vmem_cap):
        block_m = max(16, block_m // 2)
    # v7x megacore: make sure the 'parallel' M axis has >= 2 steps when possible
    # so both TensorCores get work (only then may we drop to a multiple of 8).
    if _round_up(M, block_m) // block_m < 2 and M > 8:
        block_m = max(8, _round_up((M + 1) // 2, 8))
    M_pad = _round_up(M, block_m)
    num_blocks = M_pad // block_m

    x_bf = pred_embeds.reshape(M, E).astype(jnp.bfloat16)
    if M_pad != M:
        x_bf = jnp.pad(x_bf, ((0, M_pad - M), (0, 0)))
    w_bf = embed_weight.astype(jnp.bfloat16)

    kernel = functools.partial(_embeddings_kernel,
                               inv_temperature=float(1.0 / temperature))

    needed = _vmem_needed_bytes(block_m, E, V, probs_itemsize)
    vmem_limit = int(min(vmem_cap, max(int(needed * 1.5), 32 * 1024 * 1024)))

    cost = pl.CostEstimate(
        flops=int(2 * M_pad * V * E),
        transcendentals=int(M_pad * V),
        bytes_accessed=int(M_pad * E * 2 + V * E * 2 + M_pad * 4
                           + M_pad * V * probs_itemsize))

    def _run(single_buffer_w):
        w_kwargs = {"pipeline_mode": pl.Buffered(buffer_count=1)} if single_buffer_w else {}
        grid_spec = pltpu.PrefetchScalarGridSpec(
            num_scalar_prefetch=0,
            grid=(num_blocks,),
            in_specs=[
                pl.BlockSpec((block_m, E), lambda i: (i, 0)),      # X row tile (bf16)
                # Full bf16 table resident; constant index_map => single buffer.
                pl.BlockSpec((V, E), lambda i: (0, 0), **w_kwargs),
            ],
            out_specs=[
                pl.BlockSpec((block_m, 1), lambda i: (i, 0)),      # predictions
                pl.BlockSpec((block_m, V), lambda i: (i, 0)),      # softmax probs
            ],
        )
        return pl.pallas_call(
            kernel,
            grid_spec=grid_spec,
            out_shape=(
                jax.ShapeDtypeStruct((M_pad, 1), jnp.int32),
                jax.ShapeDtypeStruct((M_pad, V), probs_dtype),
            ),
            compiler_params=pltpu.CompilerParams(
                dimension_semantics=("parallel",),
                vmem_limit_bytes=vmem_limit),
            cost_estimate=cost,
        )(x_bf, w_bf)

    try:
        preds, probs = _run(single_buffer_w=True)
    except Exception:
        # Fallback in case this JAX build rejects pipeline_mode=pl.Buffered(1).
        preds, probs = _run(single_buffer_w=False)

    preds_flat = preds[:M, 0]
    predictions = preds_flat.reshape(B, S)                         # int32 token ids

    softmax_pred_probs = probs[:M].reshape(B, S, V)

    # Straight-through probs rebuilt in XLA (fuses with consumers); the kernel no
    # longer materializes this (M, V) stream.  stop_gradient mirrors .detach().
    p = softmax_pred_probs.astype(jnp.float32)
    y_hard = jax.nn.one_hot(predictions, V, dtype=jnp.float32)
    pred_probs_st = (y_hard - lax.stop_gradient(p)) + p

    # Exact f32 row gather W[idx] in the wrapper (MXU path runs bf16).  The
    # x + (W[idx] - x) combine is kept (cheap, (B,S,E) << (B,S,V)) so the forward
    # value matches the PyTorch formula's rounding and the straight-through
    # gradient wrt pred_embeds is identity.
    n_emb = jnp.take(embed_weight.astype(jnp.float32), preds_flat,
                     axis=0).reshape(B, S, E)
    pred_embeds_st = pred_embeds + lax.stop_gradient(n_emb - pred_embeds)

    return ((pred_embeds_st, pred_embeds), predictions,
            (pred_probs_st, softmax_pred_probs))


if __name__ == "__main__":
    # Small, deterministic synthetic setup (module __init__ shapes):
    #   pred_embeds: (batch_size, seq_length, embed_dim)
    #   embed_lut.weight: (vocab_size, embed_dim)
    B, S, E, V = 2, 8, 32, 128

    key = jax.random.PRNGKey(0)
    k_pred, k_lut = jax.random.split(key)
    # Module default init is zeros_(pred_embeds); use the init_value path with a
    # deterministic random tensor so the forward is non-degenerate.
    pred_embeds = jax.random.normal(k_pred, (B, S, E), dtype=jnp.float32)
    embed_weight = jax.random.normal(k_lut, (V, E), dtype=jnp.float32)

    (emb_st, emb_param), predictions, (probs_st, probs) = embeddings_forward(
        pred_embeds, embed_weight)
    jax.block_until_ready((emb_st, emb_param, predictions, probs_st, probs))

    # Light self-check against a same-precision (bf16 matmul inputs) reference.
    xr = pred_embeds.reshape(-1, E).astype(jnp.bfloat16).astype(jnp.float32)
    wr = embed_weight.astype(jnp.bfloat16).astype(jnp.float32)
    logits_ref = (xr @ wr.T).reshape(B, S, V)
    probs_ref = jax.nn.softmax(logits_ref / 0.1, axis=-1)
    chosen = jnp.take_along_axis(logits_ref, predictions[..., None], axis=-1)[..., 0]
    assert bool(jnp.all(chosen >= logits_ref.max(-1) - 1e-3)), "argmax mismatch"
    assert bool(jnp.allclose(probs, probs_ref, atol=2e-2)), "softmax probs mismatch"
    assert bool(jnp.allclose(
        probs_st, jax.nn.one_hot(predictions, V, dtype=jnp.float32),
        atol=1e-5)), "straight-through probs mismatch"
    assert bool(jnp.allclose(
        emb_st,
        jnp.take(embed_weight, predictions.reshape(-1), axis=0).reshape(B, S, E),
        atol=1e-5)), "straight-through embeds mismatch"

    print("KERNEL_OK")
</pallas_src>

<mosaic_0001>
module attributes {stable_mosaic.version = 11 : i64} {
  func.func @_embeddings_kernel(%arg0: i32, %arg1: memref<8x32xbf16, #tpu.memory_space<vmem>>, %arg2: memref<128x32xbf16, #tpu.memory_space<vmem>>, %arg3: memref<8x1xi32, #tpu.memory_space<vmem>>, %arg4: memref<8x128xf32, #tpu.memory_space<vmem>>) attributes {dimension_semantics = [#tpu.dimension_semantics<parallel>], iteration_bounds = array<i64: 2>, scalar_prefetch = 0 : i64, scratch_operands = 0 : i64, tpu.core_type = #tpu.core_type<tc>, window_params = [{transform_indices = @transform_0, window_bounds = array<i64: 8, 32>}, {pipeline_mode = #tpu.pipeline_mode<synchronous>, transform_indices = @transform_1, window_bounds = array<i64: 128, 32>}, {transform_indices = @transform_2, window_bounds = array<i64: 8, 1>}, {transform_indices = @transform_3, window_bounds = array<i64: 8, 128>}]} {
    %c0 = arith.constant 0 : index
    %c0_0 = arith.constant 0 : index
    %0 = vector.load %arg1[%c0, %c0_0] : memref<8x32xbf16, #tpu.memory_space<vmem>>, vector<8x32xbf16>
    %c0_1 = arith.constant 0 : index
    %c0_2 = arith.constant 0 : index
    %1 = vector.load %arg2[%c0_1, %c0_2] : memref<128x32xbf16, #tpu.memory_space<vmem>>, vector<128x32xbf16>
    %cst = arith.constant dense<0.000000e+00> : vector<8x128xf32>
    %2 = tpu.matmul %0, %1, %cst {dimension_numbers = #tpu.dot_dimension_numbers<[1], [1], [0], [0], [0, 0, 1, 0], [], []>} : vector<8x32xbf16>, vector<128x32xbf16>, vector<8x128xf32> -> vector<8x128xf32>
    %cst_3 = arith.constant 1.000000e+01 : f32
    %3 = vector.broadcast %cst_3 : f32 to vector<8x128xf32>
    %4 = arith.mulf %2, %3 : vector<8x128xf32>
    %cst_4 = arith.constant dense<0xFF800000> : vector<8xf32>
    %5 = vector.multi_reduction <maximumf>, %4, %cst_4 [1] : vector<8x128xf32> to vector<8xf32>
    %6 = vector.shape_cast %5 : vector<8xf32> to vector<8x1xf32>
    %7 = vector.broadcast %6 : vector<8x1xf32> to vector<8x128xf32>
    %8 = arith.subf %4, %7 : vector<8x128xf32>
    %9 = math.exp %8 : vector<8x128xf32>
    %cst_5 = arith.constant dense<0.000000e+00> : vector<8xf32>
    %10 = vector.multi_reduction <add>, %9, %cst_5 [1] : vector<8x128xf32> to vector<8xf32>
    %11 = vector.shape_cast %10 : vector<8xf32> to vector<8x1xf32>
    %12 = tpu.reciprocal %11 {approx = true} : vector<8x1xf32> -> vector<8x1xf32>
    %13 = vector.broadcast %12 : vector<8x1xf32> to vector<8x128xf32>
    %14 = arith.mulf %9, %13 : vector<8x128xf32>
    %15 = tpu.iota {dimensions = array<i32: 1>} : vector<8x128xi32>
    %16 = vector.broadcast %6 : vector<8x1xf32> to vector<8x128xf32>
    %17 = arith.cmpf oeq, %4, %16 : vector<8x128xf32>
    %c128_i32 = arith.constant 128 : i32
    %18 = vector.broadcast %c128_i32 : i32 to vector<8x128xi32>
    %19 = arith.select %17, %15, %18 : vector<8x128xi1>, vector<8x128xi32>
    %cst_6 = arith.constant dense<2147483647> : vector<8xi32>
    %20 = vector.multi_reduction <minsi>, %19, %cst_6 [1] : vector<8x128xi32> to vector<8xi32>
    %21 = vector.shape_cast %20 : vector<8xi32> to vector<8x1xi32>
    %c0_7 = arith.constant 0 : index
    %c0_8 = arith.constant 0 : index
    %22 = vector.load %arg3[%c0_7, %c0_8] : memref<8x1xi32, #tpu.memory_space<vmem>>, vector<8x1xi32>
    tpu.vector_store %arg3[%c0_7, %c0_8], %21 {strides = array<i32>} : memref<8x1xi32, #tpu.memory_space<vmem>>, vector<8x1xi32>,
    %c0_9 = arith.constant 0 : index
    %c0_10 = arith.constant 0 : index
    %23 = vector.load %arg4[%c0_9, %c0_10] : memref<8x128xf32, #tpu.memory_space<vmem>>, vector<8x128xf32>
    tpu.vector_store %arg4[%c0_9, %c0_10], %14 {strides = array<i32>} : memref<8x128xf32, #tpu.memory_space<vmem>>, vector<8x128xf32>,
    return
  }
  func.func @transform_0(%arg0: i32) -> (i32, i32) {
    %c0_i32 = arith.constant 0 : i32
    %c0_i32_0 = arith.constant 0 : i32
    return %arg0, %c0_i32 : i32, i32
  }
  func.func @transform_1(%arg0: i32) -> (i32, i32) {
    %c0_i32 = arith.constant 0 : i32
    %c0_i32_0 = arith.constant 0 : i32
    %c0_i32_1 = arith.constant 0 : i32
    return %c0_i32, %c0_i32_0 : i32, i32
  }
  func.func @transform_2(%arg0: i32) -> (i32, i32) {
    %c0_i32 = arith.constant 0 : i32
    %c0_i32_0 = arith.constant 0 : i32
    return %arg0, %c0_i32 : i32, i32
  }
  func.func @transform_3(%arg0: i32) -> (i32, i32) {
    %c0_i32 = arith.constant 0 : i32
    %c0_i32_0 = arith.constant 0 : i32
    return %arg0, %c0_i32 : i32, i32
  }
}

module attributes {stable_mosaic.version = 11 : i64} {
  func.func @_embeddings_kernel(%arg0: i32, %arg1: memref<8x32xbf16, #tpu.memory_space<vmem>>, %arg2: memref<128x32xbf16, #tpu.memory_space<vmem>>, %arg3: memref<8x1xi32, #tpu.memory_space<vmem>>, %arg4: memref<8x128xf32, #tpu.memory_space<vmem>>) attributes {dimension_semantics = [#tpu.dimension_semantics<parallel>], iteration_bounds = array<i64: 2>, scalar_prefetch = 0 : i64, scratch_operands = 0 : i64, tpu.core_type = #tpu.core_type<tc>, window_params = [{transform_indices = @transform_0, window_bounds = array<i64: 8, 32>}, {pipeline_mode = #tpu.pipeline_mode<synchronous>, transform_indices = @transform_1, window_bounds = array<i64: 128, 32>}, {transform_indices = @transform_2, window_bounds = array<i64: 8, 1>}, {transform_indices = @transform_3, window_bounds = array<i64: 8, 128>}]} {
    %c0 = arith.constant 0 : index
    %c0_0 = arith.constant 0 : index
    %0 = vector.load %arg1[%c0, %c0_0] : memref<8x32xbf16, #tpu.memory_space<vmem>>, vector<8x32xbf16>
    %c0_1 = arith.constant 0 : index
    %c0_2 = arith.constant 0 : index
    %1 = vector.load %arg2[%c0_1, %c0_2] : memref<128x32xbf16, #tpu.memory_space<vmem>>, vector<128x32xbf16>
    %cst = arith.constant dense<0.000000e+00> : vector<8x128xf32>
    %2 = tpu.matmul %0, %1, %cst {dimension_numbers = #tpu.dot_dimension_numbers<[1], [1], [0], [0], [0, 0, 1, 0], [], []>} : vector<8x32xbf16>, vector<128x32xbf16>, vector<8x128xf32> -> vector<8x128xf32>
    %cst_3 = arith.constant 1.000000e+01 : f32
    %3 = vector.broadcast %cst_3 : f32 to vector<8x128xf32>
    %4 = arith.mulf %2, %3 : vector<8x128xf32>
    %cst_4 = arith.constant dense<0xFF800000> : vector<8xf32>
    %5 = vector.multi_reduction <maximumf>, %4, %cst_4 [1] : vector<8x128xf32> to vector<8xf32>
    %6 = vector.shape_cast %5 : vector<8xf32> to vector<8x1xf32>
    %7 = vector.broadcast %6 : vector<8x1xf32> to vector<8x128xf32>
    %8 = arith.subf %4, %7 : vector<8x128xf32>
    %9 = math.exp %8 : vector<8x128xf32>
    %cst_5 = arith.constant dense<0.000000e+00> : vector<8xf32>
    %10 = vector.multi_reduction <add>, %9, %cst_5 [1] : vector<8x128xf32> to vector<8xf32>
    %11 = vector.shape_cast %10 : vector<8xf32> to vector<8x1xf32>
    %12 = tpu.reciprocal %11 {approx = true} : vector<8x1xf32> -> vector<8x1xf32>
    %13 = vector.broadcast %12 : vector<8x1xf32> to vector<8x128xf32>
    %14 = arith.mulf %9, %13 : vector<8x128xf32>
    %15 = tpu.iota {dimensions = array<i32: 1>} : vector<8x128xi32>
    %16 = vector.broadcast %6 : vector<8x1xf32> to vector<8x128xf32>
    %17 = arith.cmpf oeq, %4, %16 : vector<8x128xf32>
    %c128_i32 = arith.constant 128 : i32
    %18 = vector.broadcast %c128_i32 : i32 to vector<8x128xi32>
    %19 = arith.select %17, %15, %18 : vector<8x128xi1>, vector<8x128xi32>
    %cst_6 = arith.constant dense<2147483647> : vector<8xi32>
    %20 = vector.multi_reduction <minsi>, %19, %cst_6 [1] : vector<8x128xi32> to vector<8xi32>
    %21 = vector.shape_cast %20 : vector<8xi32> to vector<8x1xi32>
    %c0_7 = arith.constant 0 : index
    %c0_8 = arith.constant 0 : index
    %22 = vector.load %arg3[%c0_7, %c0_8] : memref<8x1xi32, #tpu.memory_space<vmem>>, vector<8x1xi32>
    tpu.vector_store %arg3[%c0_7, %c0_8], %21 {strides = array<i32>} : memref<8x1xi32, #tpu.memory_space<vmem>>, vector<8x1xi32>,
    %c0_9 = arith.constant 0 : index
    %c0_10 = arith.constant 0 : index
    %23 = vector.load %arg4[%c0_9, %c0_10] : memref<8x128xf32, #tpu.memory_space<vmem>>, vector<8x128xf32>
    tpu.vector_store %arg4[%c0_9, %c0_10], %14 {strides = array<i32>} : memref<8x128xf32, #tpu.memory_space<vmem>>, vector<8x128xf32>,
    return
  }
  func.func @transform_0(%arg0: i32) -> (i32, i32) {
    %c0_i32 = arith.constant 0 : i32
    %c0_i32_0 = arith.constant 0 : i32
    return %arg0, %c0_i32 : i32, i32
  }
  func.func @transform_1(%arg0: i32) -> (i32, i32) {
    %c0_i32 = arith.constant 0 : i32
    %c0_i32_0 = arith.constant 0 : i32
    %c0_i32_1 = arith.constant 0 : i32
    return %c0_i32, %c0_i32_0 : i32, i32
  }
  func.func @transform_2(%arg0: i32) -> (i32, i32) {
    %c0_i32 = arith.constant 0 : i32
    %c0_i32_0 = arith.constant 0 : i32
    return %arg0, %c0_i32 : i32, i32
  }
  func.func @transform_3(%arg0: i32) -> (i32, i32) {
    %c0_i32 = arith.constant 0 : i32
    %c0_i32_0 = arith.constant 0 : i32
    return %arg0, %c0_i32 : i32, i32
  }
}

</mosaic_0001>

<llo_original>
// kernel: tpu_custom_call.1
$region0: #{tpu_custom_call.1}
  #allocation0 [shape = 'u32[]', space=smem, size = 0x4, offset = 0x4, fixed_abs, tag = 'smem constant byte address 0x4 - core index']
  #allocation1 [shape = 'u32[144,128]{1,0:T(1,128)}', space=vmem, size = 0x12000, scoped, tag = 'internal scratch']
  %s0 = inlined_call_operand.vmem [shape: bf16[16,32], index: 0, kind: input, shape index: {}]
  %s1 = inlined_call_operand.vmem [shape: bf16[128,32], index: 1, kind: input, shape index: {}]
  %s2 = inlined_call_operand.vmem [shape: s32[16,1], index: 2, kind: output, shape index: {0}]
  %s3 = inlined_call_operand.hbm [shape: f32[16,128], index: 3, kind: output, shape index: {1}]
  %4 = xla_tuple %s2, %s3
  %s5 = sld [smem:[#allocation0]]
  $region49: #{tpu_custom_call.1} parent=0
    _
  %s7 = ssub.s32 1, %s5
  %s8 = scalar_select 0, %s7, %s5
  $region1: #{tpu_custom_call.1} parent=0
    #allocation2 [shape = 'u8[8192]{0}', space=vmem, size = 0x2000, scoped, tag = 'output window, operand 1']
    #allocation3 [shape = 's32[2]{0}', space=sflag, size = 0x8, scoped, tag = 'scoped memory for tpu_custom_call.1']
    %9 = vsyncpa [#allocation3], 0
    %s10 = scalar_lea.sflag [#allocation3], 1
    %11 = vsyncpa %s10, 0
    loop: start=0, step=1, limit=4
    $region2: #{tpu_custom_call.1} parent=1 // loop_pre_header
      _
    $region3: #{tpu_custom_call.1} parent=1 // loop_header
      %s13 = sphi 0, %s17
      %p14 = scmp.ge.s32.totalorder %s13, 4
      %s23 = sphi 0, %s25
      %s26 = sphi 0, %s23
      %s27 = sphi 0, %s26
      %s43 = sphi 0, %s27
      %s47 = sphi 0, %s47
      %s49 = sphi 0, %s47
      %s50 = sphi 0, %s49
      %s64 = sphi 0, %s50
      %s70 = sphi 0, %s72
      %s73 = sphi 0, %s70
      %s74 = sphi 0, %s73
      %s90 = sphi 0, %s74
      %s96 = sphi 0, %s98
      %s99 = sphi 0, %s96
      %s100 = sphi 0, %s99
      %s116 = sphi 0, %s100
    $region4: #{tpu_custom_call.1} parent=1 // loop_header_branch
      %16 = sbr.rel (%p14) target = $region8
    $region5: #{tpu_custom_call.1} parent=1 // loop_body
      %s18 = ssub.s32 %s13, 1
      %s19 = ssub.s32 %s13, 2
      %s20 = sadd.s32 %s13, 1
      %s21 = ssub.s32 %s13, %s20
      %p22 = scmp.eq.s32.totalorder %s21, 0
      %s24 = sadd.s32 %s23, 1
      %s25 = scalar_select %p22, %s23, %s24
      %p28 = pneg %p22
      %p29 = scmp.eq.s32.totalorder %s13, 1
      %p30 = por %p28, %p29
      %p31 = scmp.ne.s32.totalorder %s23, %s26
      %p32 = scmp.eq.s32.totalorder %s13, 0
      %p33 = por %p31, %p32
      %p34 = scmp.ne.s32.totalorder %s23, %s26
      %p35 = scmp.eq.s32.totalorder %s18, 1
      %p36 = por %p34, %p35
      %p37 = scmp.ne.s32.totalorder %s26, %s27
      %p38 = scmp.eq.s32.totalorder %s18, 0
      %p39 = por %p37, %p38
      %p40 = scmp.ne.s32.totalorder %s26, %s27
      %p41 = scmp.eq.s32.totalorder %s19, 1
      %p42 = por %p40, %p41
      %p44 = scmp.ne.s32.totalorder %s27, %s43
      %p45 = scmp.eq.s32.totalorder %s19, 0
      %p46 = por %p44, %p45
      %s48 = sadd.s32 %s47, 1
      %p51 = scmp.eq.s32.totalorder %s13, 1
      %p52 = scmp.ne.s32.totalorder %s47, %s49
      %p53 = scmp.eq.s32.totalorder %s13, 0
      %p54 = por %p52, %p53
      %p55 = scmp.ne.s32.totalorder %s47, %s49
      %p56 = scmp.eq.s32.totalorder %s18, 1
      %p57 = por %p55, %p56
      %p58 = scmp.ne.s32.totalorder %s49, %s50
      %p59 = scmp.eq.s32.totalorder %s18, 0
      %p60 = por %p58, %p59
      %p61 = scmp.ne.s32.totalorder %s49, %s50
      %p62 = scmp.eq.s32.totalorder %s19, 1
      %p63 = por %p61, %p62
      %p65 = scmp.ne.s32.totalorder %s50, %s64
      %p66 = scmp.eq.s32.totalorder %s19, 0
      %p67 = por %p65, %p66
      %s68 = ssub.s32 %s13, %s20
      %p69 = scmp.eq.s32.totalorder %s68, 0
      %s71 = sadd.s32 %s70, 1
      %s72 = scalar_select %p69, %s70, %s71
      %p75 = pneg %p69
      %p76 = scmp.eq.s32.totalorder %s13, 1
      %p77 = por %p75, %p76
      %p78 = scmp.ne.s32.totalorder %s70, %s73
      %p79 = scmp.eq.s32.totalorder %s13, 0
      %p80 = por %p78, %p79
      %p81 = scmp.ne.s32.totalorder %s70, %s73
      %p82 = scmp.eq.s32.totalorder %s18, 1
      %p83 = por %p81, %p82
      %p84 = scmp.ne.s32.totalorder %s73, %s74
      %p85 = scmp.eq.s32.totalorder %s18, 0
      %p86 = por %p84, %p85
      %p87 = scmp.ne.s32.totalorder %s73, %s74
      %p88 = scmp.eq.s32.totalorder %s19, 1
      %p89 = por %p87, %p88
      %p91 = scmp.ne.s32.totalorder %s74, %s90
      %p92 = scmp.eq.s32.totalorder %s19, 0
      %p93 = por %p91, %p92
      %s94 = ssub.s32 %s13, %s20
      %p95 = scmp.eq.s32.totalorder %s94, 0
      %s97 = sadd.s32 %s96, 1
      %s98 = scalar_select %p95, %s96, %s97
      %p101 = pneg %p95
      %p102 = scmp.eq.s32.totalorder %s13, 1
      %p103 = por %p101, %p102
      %p104 = scmp.ne.s32.totalorder %s96, %s99
      %p105 = scmp.eq.s32.totalorder %s13, 0
      %p106 = por %p104, %p105
      %p107 = scmp.ne.s32.totalorder %s96, %s99
      %p108 = scmp.eq.s32.totalorder %s18, 1
      %p109 = por %p107, %p108
      %p110 = scmp.ne.s32.totalorder %s99, %s100
      %p111 = scmp.eq.s32.totalorder %s18, 0
      %p112 = por %p110, %p111
      %p113 = scmp.ne.s32.totalorder %s99, %s100
      %p114 = scmp.eq.s32.totalorder %s19, 1
      %p115 = por %p113, %p114
      %p117 = scmp.ne.s32.totalorder %s100, %s116
      %p118 = scmp.eq.s32.totalorder %s19, 0
      %p119 = por %p117, %p118
      %p120 = scmp.le.s32.totalorder 1, %s13
      %p121 = scmp.lt.s32.totalorder %s13, 3
      %p122 = pnand %p120, %p121
      %p123 = pneg %p122
      // Predicated region
      $region9: #{tpu_custom_call.1} parent=5 // pred_check
        _
      $region10: #{tpu_custom_call.1} parent=5 // pred_check_branch
        %125 = sbr.rel (%p122) target = $region12
      $region11: #{tpu_custom_call.1} parent=5 // pred_region
        %s126 = ssub.s32 %s13, 1
        // Predicated region
        $region13: #{tpu_custom_call.1} parent=11 // pred_check
          %p127 = pneg %p60
        $region14: #{tpu_custom_call.1} parent=11 // pred_check_branch
          %129 = sbr.rel (%p127) target = $region16
        $region15: #{tpu_custom_call.1} parent=11 // pred_region
          _
        $region16: #{tpu_custom_call.1} parent=11 // pred_fallthru
          _
      $region12: #{tpu_custom_call.1} parent=5 // pred_fallthru
        _
      %p130 = scmp.lt.s32.totalorder %s13, 2
      // Predicated region
      $region17: #{tpu_custom_call.1} parent=5 // pred_check
        %p131 = pneg %p130
      $region18: #{tpu_custom_call.1} parent=5 // pred_check_branch
        %133 = sbr.rel (%p131) target = $region20
      $region19: #{tpu_custom_call.1} parent=5 // pred_region
        // Predicated region
        $region21: #{tpu_custom_call.1} parent=19 // pred_check
          %p134 = pneg %p33
        $region22: #{tpu_custom_call.1} parent=19 // pred_check_branch
          %136 = sbr.rel (%p134) target = $region24
        $region23: #{tpu_custom_call.1} parent=19 // pred_region
          %p137 = scmp.lt.s32.totalorder %s13, 1
          %s138 = scalar_select %p137, %s13, 1
          %s139 = smul.addr %s138, 4
          %s140 = scalar_lea.vmem %s0, %s139
        $region24: #{tpu_custom_call.1} parent=19 // pred_fallthru
          _
      $region20: #{tpu_custom_call.1} parent=5 // pred_fallthru
        _
      %p141 = scmp.le.s32.totalorder 1, %s13
      %p142 = scmp.lt.s32.totalorder %s13, 3
      %p143 = pnand %p141, %p142
      %p144 = pneg %p143
      // Predicated region
      $region25: #{tpu_custom_call.1} parent=5 // pred_check
        _
      $region26: #{tpu_custom_call.1} parent=5 // pred_check_branch
        %146 = sbr.rel (%p143) target = $region28
      $region27: #{tpu_custom_call.1} parent=5 // pred_region
        %s147 = ssub.s32 %s13, 1
        %p148 = scmp.lt.s32.totalorder %s18, 1
        %s149 = scalar_select %p148, %s18, 1
        %s150 = smul.addr %s149, 4
        %s151 = scalar_lea.vmem %s0, %s150
        %p152 = pneg %p39
        %p153 = pneg %p36
        %p154 = pneg %p60
        %p155 = pneg %p57
        %p156 = pneg %p86
        %p157 = pneg %p83
        %p158 = scmp.lt.s32.totalorder %s18, 1
        %s159 = scalar_select %p158, %s18, 1
        %s160 = smul.addr %s159, 8
        %s161 = scalar_lea.vmem %s2, %s160
        %p162 = pneg %p112
        %p163 = pneg %p109
        %s164 = sand.u32 %s99, 1
        %s165 = scalar_lea.sflag [#allocation3], %s164
        %s166 = sand.u32 %s99, 1
        %s167 = smul.addr %s166, 8
        %s168 = scalar_lea.vmem [#allocation2], %s167
        %p169 = scmp.lt.s32.totalorder %s18, 1
        %s170 = scalar_select %p169, %s18, 1
        %s171 = smul.addr %s170, 4
        %s172 = scalar_lea.vmem %s0, %s171
        %p173 = scmp.lt.s32.totalorder %s18, 1
        %s174 = scalar_select %p173, %s18, 1
        %s175 = smul.addr %s174, 8
        %s176 = scalar_lea.vmem %s2, %s175
        %v178 = vld [vmem:[%s172] sm:$0xf]
        %v179 = vld [vmem:[%s1] sm:$0xf]
        %v180 = vld [vmem:[%s1 + $0x4] sm:$0xf]
        %v181 = vld [vmem:[%s1 + $0x8] sm:$0xf]
        %v182 = vld [vmem:[%s1 + $0xc] sm:$0xf]
        %v183 = vld [vmem:[%s1 + $0x10] sm:$0xf]
        %v184 = vld [vmem:[%s1 + $0x14] sm:$0xf]
        %v185 = vld [vmem:[%s1 + $0x18] sm:$0xf]
        %v186 = vld [vmem:[%s1 + $0x1c] sm:$0xf]
        %v187 = vld [vmem:[%s1 + $0x20] sm:$0xf]
        %v188 = vld [vmem:[%s1 + $0x24] sm:$0xf]
        %v189 = vld [vmem:[%s1 + $0x28] sm:$0xf]
        %v190 = vld [vmem:[%s1 + $0x2c] sm:$0xf]
        %v191 = vld [vmem:[%s1 + $0x30] sm:$0xf]
        %v192 = vld [vmem:[%s1 + $0x34] sm:$0xf]
        %v193 = vld [vmem:[%s1 + $0x38] sm:$0xf]
        %v194 = vld [vmem:[%s1 + $0x3c] sm:$0xf]
        %v211 = vunpack.c.l.b16 %v179
        %v212 = vunpack.c.l.b16 %v180
        %v213 = vunpack.c.l.b16 %v181
        %v214 = vunpack.c.l.b16 %v182
        %v215 = vunpack.c.l.b16 %v183
        %v216 = vunpack.c.l.b16 %v184
        %v217 = vunpack.c.l.b16 %v185
        %v218 = vunpack.c.l.b16 %v186
        %v219 = vunpack.c.l.b16 %v187
        %v220 = vunpack.c.l.b16 %v188
        %v221 = vunpack.c.l.b16 %v189
        %v222 = vunpack.c.l.b16 %v190
        %v223 = vunpack.c.l.b16 %v191
        %v224 = vunpack.c.l.b16 %v192
        %v225 = vunpack.c.l.b16 %v193
        %v226 = vunpack.c.l.b16 %v194
        %v227 = vpack.c.b16 %v212, %v211
        %v228 = vpack.c.b16 %v214, %v213
        %v229 = vpack.c.b16 %v216, %v215
        %v230 = vpack.c.b16 %v218, %v217
        %v231 = vpack.c.b16 %v220, %v219
        %v232 = vpack.c.b16 %v222, %v221
        %v233 = vpack.c.b16 %v224, %v223
        %v234 = vpack.c.b16 %v226, %v225
        %vm235 = vcmask 261120
        %v237 = vsel %vm235, %v178, 0
        %v240 = vsel %vm235, %v227, 0
        %v243 = vsel %vm235, %v228, 0
        %v246 = vsel %vm235, %v229, 0
        %v249 = vsel %vm235, %v230, 0
        %v252 = vsel %vm235, %v231, 0
        %v255 = vsel %vm235, %v232, 0
        %v258 = vsel %vm235, %v233, 0
        %v261 = vsel %vm235, %v234, 0
        %263 = vmatprep.subr.bf16.mxu0 0
        %264 = vmatpush1.bf16.xpose.msra.mxu0 %v261
        %265 = vmatprep.subr.bf16.mxu0 0
        %266 = vmatpush1.bf16.xpose.msra.mxu0 %v258
        %267 = vmatprep.subr.bf16.mxu0 0
        %268 = vmatpush1.bf16.xpose.msra.mxu0 %v255
        %269 = vmatprep.subr.bf16.mxu0 0
        %270 = vmatpush1.bf16.xpose.msra.mxu0 %v252
        %271 = vmatprep.subr.bf16.mxu0 0
        %272 = vmatpush1.bf16.xpose.msra.mxu0 %v249
        %273 = vmatprep.subr.bf16.mxu0 0
        %274 = vmatpush1.bf16.xpose.msra.mxu0 %v246
        %275 = vmatprep.subr.bf16.mxu0 0
        %276 = vmatpush1.bf16.xpose.msra.mxu0 %v243
        %277 = vmatprep.subr.bf16.mxu0 0
        %278 = vmatpush1.bf16.xpose.msra.mxu0 %v240
        %279 = vmatprep.subr.bf16.mxu0 0
        %280 = vmatpush2.bf16.xpose.msra.mxu0 0
        %281 = vmatprep.subr.bf16.mxu0 0
        %282 = vmatpush2.bf16.xpose.msra.mxu0 0
        %283 = vmatprep.subr.bf16.mxu0 0
        %284 = vmatpush2.bf16.xpose.msra.mxu0 0
        %285 = vmatprep.subr.bf16.mxu0 0
        %286 = vmatpush2.bf16.xpose.msra.mxu0 0
        %287 = vmatprep.subr.bf16.mxu0 0
        %288 = vmatpush2.bf16.xpose.msra.mxu0 0
        %289 = vmatprep.subr.bf16.mxu0 0
        %290 = vmatpush2.bf16.xpose.msra.mxu0 0
        %291 = vmatprep.subr.bf16.mxu0 0
        %292 = vmatpush2.bf16.xpose.msra.mxu0 0
        %293 = vmatprep.subr.bf16.mxu0 0
        %294 = vmatpush2.bf16.xpose.msra.mxu0 0
        %295 = vmatprep.mubr.bf16.mxu0 0
        %296 = vmatmul.mubr.bf16.gmra.mxu0 %v237
        %v297 = vpop.f32.mrf.mxu0
        %v298 = vadd.f32 0.0, %v297
        %v299 = vpop.f32.mrf.mxu0
        %v300 = vpop.f32.mrf.mxu0
        %v301 = vpop.f32.mrf.mxu0
        %302 = vdwg.mxu0
        %v303 = vmul.f32 %v298, 10.0
        %304 = vmax.xlane.f32.xlu0 %v303
        %v305 = vpop.xlane.xlu0 %304
        %v306 = vsub.f32 %v303, %v305
        %v307 = vmul.f32 %v306, 1.442695
        %v308 = vpow.pop %v307
        %309 = vadd.xlane.f32.xlu0 %v308
        %v310 = vpop.xlane.xlu0 %309
        %v311 = vrcp.pop %v310
        %v312 = vmul.f32 %v308, %v311
        %v313 = vlaneseq
        %v314 = vand.u32 %v313, 127
        %vm315 = vcmp.eq.f32.partialorder %v303, %v305
        %v316 = vsel %vm315, %v314, 128
        %v317 = vand.u32 %v316, 65535
        %v318 = vshra.s32 %v316, 16
        %v319 = vcvt.s32.f32 %v317
        %v320 = vcvt.s32.f32 %v318
        %321 = vmin.xlane.f32.xlu0 %v320
        %v322 = vpop.xlane.xlu0 %321
        %vm323 = vcmp.eq.f32.partialorder %v320, %v322
        %v324 = vsel %vm323, %v319, inf
        %325 = vmin.xlane.f32.xlu0 %v324
        %v326 = vpop.xlane.xlu0 %325
        %v327 = vcvt.f32.s32 %v326
        %v328 = vcvt.f32.s32 %v322
        %v329 = vshll.u32 %v328, 16
        %v330 = vadd.s32 %v329, %v327
        %vm331 = vcmask 7168
        %332 = vst.msk [vmem:[%s176] sm:$0xff] %vm331, %v330
        %333 = vst [vmem:[%s168] sm:$0xff] %v312
        %p334 = scmp.lt.s32.totalorder %s18, 1
        %s335 = scalar_select %p334, %s18, 1
        %s336 = smul.addr %s335, 8
        %s337 = scalar_lea.vmem %s2, %s336
        %s338 = sand.u32 %s99, 1
        %s339 = scalar_lea.sflag [#allocation3], %s338
        %s340 = sand.u32 %s99, 1
        %s341 = smul.addr %s340, 8
        %s342 = scalar_lea.vmem [#allocation2], %s341
        // Predicated region
        $region29: #{tpu_custom_call.1} parent=27 // pred_check
          %p343 = pneg %p83
        $region30: #{tpu_custom_call.1} parent=27 // pred_check_branch
          %345 = sbr.rel (%p343) target = $region32
        $region31: #{tpu_custom_call.1} parent=27 // pred_region
          _
        $region32: #{tpu_custom_call.1} parent=27 // pred_fallthru
          _
        // Predicated region
        $region33: #{tpu_custom_call.1} parent=27 // pred_check
          %p346 = pneg %p109
        $region34: #{tpu_custom_call.1} parent=27 // pred_check_branch
          %348 = sbr.rel (%p346) target = $region36
        $region35: #{tpu_custom_call.1} parent=27 // pred_region
          %s350 = ssub.s32 128, 128
          %351 = vsyncadd %s339, %s350
          %s352 = smul.addr %s18, 128
          %s353 = scalar_lea.hbm %s3, %s352
          %s355 = sshll.u32 %s342, 4
          %s356 = int_to_ptr.vmem [resolvable:$true] %s355
          %358 = dma.vmem_to_hbm [thread:$0]  %s356, 128, %s353, %s339
        $region36: #{tpu_custom_call.1} parent=27 // pred_fallthru
          _
      $region28: #{tpu_custom_call.1} parent=5 // pred_fallthru
        _
      %p359 = scmp.le.s32.totalorder 2, %s13
      // Predicated region
      $region37: #{tpu_custom_call.1} parent=5 // pred_check
        %p360 = pneg %p359
      $region38: #{tpu_custom_call.1} parent=5 // pred_check_branch
        %362 = sbr.rel (%p360) target = $region40
      $region39: #{tpu_custom_call.1} parent=5 // pred_region
        %s363 = ssub.s32 %s13, 2
        // Predicated region
        $region41: #{tpu_custom_call.1} parent=39 // pred_check
          %p364 = pneg %p89
        $region42: #{tpu_custom_call.1} parent=39 // pred_check_branch
          %366 = sbr.rel (%p364) target = $region44
        $region43: #{tpu_custom_call.1} parent=39 // pred_region
          %p367 = scmp.lt.s32.totalorder %s19, 1
          %s368 = scalar_select %p367, %s19, 1
          %s369 = smul.addr %s368, 8
          %s370 = scalar_lea.vmem %s2, %s369
        $region44: #{tpu_custom_call.1} parent=39 // pred_fallthru
          _
        // Predicated region
        $region45: #{tpu_custom_call.1} parent=39 // pred_check
          %p371 = pneg %p115
        $region46: #{tpu_custom_call.1} parent=39 // pred_check_branch
          %373 = sbr.rel (%p371) target = $region48
        $region47: #{tpu_custom_call.1} parent=39 // pred_region
          %s374 = sand.u32 %s100, 1
          %s375 = scalar_lea.sflag [#allocation3], %s374
          %s376 = sand.u32 %s100, 1
          %s377 = smul.addr %s376, 8
          %s378 = scalar_lea.vmem [#allocation2], %s377
          %379 = dma.done %s375, 128
        $region48: #{tpu_custom_call.1} parent=39 // pred_fallthru
          _
      $region40: #{tpu_custom_call.1} parent=5 // pred_fallthru
        _
    $region6: #{tpu_custom_call.1} parent=1 // loop_footer
      %s17 = sadd.s32 1, %s13
    $region7: #{tpu_custom_call.1} parent=1 // loop_footer_branch
      %12 = sbr.rel target = $region3
    $region8: #{tpu_custom_call.1} parent=1 // loop_exit
      _
    %380 = vsyncpa [#allocation3], 1
    %s381 = scalar_lea.sflag [#allocation3], 1
    %382 = vsyncpa %s381, 1

// kernel: tpu_custom_call.1
$region0: #{tpu_custom_call.1}
  #allocation0 [shape = 'u32[]', space=smem, size = 0x4, offset = 0x4, fixed_abs, tag = 'smem constant byte address 0x4 - core index']
  #allocation1 [shape = 'u32[144,128]{1,0:T(1,128)}', space=vmem, size = 0x12000, scoped, tag = 'internal scratch']
  %s0 = inlined_call_operand.vmem [shape: bf16[16,32], index: 0, kind: input, shape index: {}]
  %s1 = inlined_call_operand.vmem [shape: bf16[128,32], index: 1, kind: input, shape index: {}]
  %s2 = inlined_call_operand.vmem [shape: s32[16,1], index: 2, kind: output, shape index: {0}]
  %s3 = inlined_call_operand.hbm [shape: f32[16,128], index: 3, kind: output, shape index: {1}]
  %4 = xla_tuple %s2, %s3
  %s5 = sld [smem:[#allocation0]]
  $region49: #{tpu_custom_call.1} parent=0
    _
  %s7 = ssub.s32 1, %s5
  %s8 = scalar_select 0, %s7, %s5
  $region1: #{tpu_custom_call.1} parent=0
    #allocation2 [shape = 'u8[8192]{0}', space=vmem, size = 0x2000, scoped, tag = 'output window, operand 1']
    #allocation3 [shape = 's32[2]{0}', space=sflag, size = 0x8, scoped, tag = 'scoped memory for tpu_custom_call.1']
    %9 = vsyncpa [#allocation3], 0
    %s10 = scalar_lea.sflag [#allocation3], 1
    %11 = vsyncpa %s10, 0
    loop: start=0, step=1, limit=4
    $region2: #{tpu_custom_call.1} parent=1 // loop_pre_header
      _
    $region3: #{tpu_custom_call.1} parent=1 // loop_header
      %s13 = sphi 0, %s17
      %p14 = scmp.ge.s32.totalorder %s13, 4
      %s23 = sphi 0, %s25
      %s26 = sphi 0, %s23
      %s27 = sphi 0, %s26
      %s43 = sphi 0, %s27
      %s47 = sphi 0, %s47
      %s49 = sphi 0, %s47
      %s50 = sphi 0, %s49
      %s64 = sphi 0, %s50
      %s70 = sphi 0, %s72
      %s73 = sphi 0, %s70
      %s74 = sphi 0, %s73
      %s90 = sphi 0, %s74
      %s96 = sphi 0, %s98
      %s99 = sphi 0, %s96
      %s100 = sphi 0, %s99
      %s116 = sphi 0, %s100
    $region4: #{tpu_custom_call.1} parent=1 // loop_header_branch
      %16 = sbr.rel (%p14) target = $region8
    $region5: #{tpu_custom_call.1} parent=1 // loop_body
      %s18 = ssub.s32 %s13, 1
      %s19 = ssub.s32 %s13, 2
      %s20 = sadd.s32 %s13, 1
      %s21 = ssub.s32 %s13, %s20
      %p22 = scmp.eq.s32.totalorder %s21, 0
      %s24 = sadd.s32 %s23, 1
      %s25 = scalar_select %p22, %s23, %s24
      %p28 = pneg %p22
      %p29 = scmp.eq.s32.totalorder %s13, 1
      %p30 = por %p28, %p29
      %p31 = scmp.ne.s32.totalorder %s23, %s26
      %p32 = scmp.eq.s32.totalorder %s13, 0
      %p33 = por %p31, %p32
      %p34 = scmp.ne.s32.totalorder %s23, %s26
      %p35 = scmp.eq.s32.totalorder %s18, 1
      %p36 = por %p34, %p35
      %p37 = scmp.ne.s32.totalorder %s26, %s27
      %p38 = scmp.eq.s32.totalorder %s18, 0
      %p39 = por %p37, %p38
      %p40 = scmp.ne.s32.totalorder %s26, %s27
      %p41 = scmp.eq.s32.totalorder %s19, 1
      %p42 = por %p40, %p41
      %p44 = scmp.ne.s32.totalorder %s27, %s43
      %p45 = scmp.eq.s32.totalorder %s19, 0
      %p46 = por %p44, %p45
      %s48 = sadd.s32 %s47, 1
      %p51 = scmp.eq.s32.totalorder %s13, 1
      %p52 = scmp.ne.s32.totalorder %s47, %s49
      %p53 = scmp.eq.s32.totalorder %s13, 0
      %p54 = por %p52, %p53
      %p55 = scmp.ne.s32.totalorder %s47, %s49
      %p56 = scmp.eq.s32.totalorder %s18, 1
      %p57 = por %p55, %p56
      %p58 = scmp.ne.s32.totalorder %s49, %s50
      %p59 = scmp.eq.s32.totalorder %s18, 0
      %p60 = por %p58, %p59
      %p61 = scmp.ne.s32.totalorder %s49, %s50
      %p62 = scmp.eq.s32.totalorder %s19, 1
      %p63 = por %p61, %p62
      %p65 = scmp.ne.s32.totalorder %s50, %s64
      %p66 = scmp.eq.s32.totalorder %s19, 0
      %p67 = por %p65, %p66
      %s68 = ssub.s32 %s13, %s20
      %p69 = scmp.eq.s32.totalorder %s68, 0
      %s71 = sadd.s32 %s70, 1
      %s72 = scalar_select %p69, %s70, %s71
      %p75 = pneg %p69
      %p76 = scmp.eq.s32.totalorder %s13, 1
      %p77 = por %p75, %p76
      %p78 = scmp.ne.s32.totalorder %s70, %s73
      %p79 = scmp.eq.s32.totalorder %s13, 0
      %p80 = por %p78, %p79
      %p81 = scmp.ne.s32.totalorder %s70, %s73
      %p82 = scmp.eq.s32.totalorder %s18, 1
      %p83 = por %p81, %p82
      %p84 = scmp.ne.s32.totalorder %s73, %s74
      %p85 = scmp.eq.s32.totalorder %s18, 0
      %p86 = por %p84, %p85
      %p87 = scmp.ne.s32.totalorder %s73, %s74
      %p88 = scmp.eq.s32.totalorder %s19, 1
      %p89 = por %p87, %p88
      %p91 = scmp.ne.s32.totalorder %s74, %s90
      %p92 = scmp.eq.s32.totalorder %s19, 0
      %p93 = por %p91, %p92
      %s94 = ssub.s32 %s13, %s20
      %p95 = scmp.eq.s32.totalorder %s94, 0
      %s97 = sadd.s32 %s96, 1
      %s98 = scalar_select %p95, %s96, %s97
      %p101 = pneg %p95
      %p102 = scmp.eq.s32.totalorder %s13, 1
      %p103 = por %p101, %p102
      %p104 = scmp.ne.s32.totalorder %s96, %s99
      %p105 = scmp.eq.s32.totalorder %s13, 0
      %p106 = por %p104, %p105
      %p107 = scmp.ne.s32.totalorder %s96, %s99
      %p108 = scmp.eq.s32.totalorder %s18, 1
      %p109 = por %p107, %p108
      %p110 = scmp.ne.s32.totalorder %s99, %s100
      %p111 = scmp.eq.s32.totalorder %s18, 0
      %p112 = por %p110, %p111
      %p113 = scmp.ne.s32.totalorder %s99, %s100
      %p114 = scmp.eq.s32.totalorder %s19, 1
      %p115 = por %p113, %p114
      %p117 = scmp.ne.s32.totalorder %s100, %s116
      %p118 = scmp.eq.s32.totalorder %s19, 0
      %p119 = por %p117, %p118
      %p120 = scmp.le.s32.totalorder 1, %s13
      %p121 = scmp.lt.s32.totalorder %s13, 3
      %p122 = pnand %p120, %p121
      %p123 = pneg %p122
      // Predicated region
      $region9: #{tpu_custom_call.1} parent=5 // pred_check
        _
      $region10: #{tpu_custom_call.1} parent=5 // pred_check_branch
        %125 = sbr.rel (%p122) target = $region12
      $region11: #{tpu_custom_call.1} parent=5 // pred_region
        %s126 = ssub.s32 %s13, 1
        // Predicated region
        $region13: #{tpu_custom_call.1} parent=11 // pred_check
          %p127 = pneg %p60
        $region14: #{tpu_custom_call.1} parent=11 // pred_check_branch
          %129 = sbr.rel (%p127) target = $region16
        $region15: #{tpu_custom_call.1} parent=11 // pred_region
          _
        $region16: #{tpu_custom_call.1} parent=11 // pred_fallthru
          _
      $region12: #{tpu_custom_call.1} parent=5 // pred_fallthru
        _
      %p130 = scmp.lt.s32.totalorder %s13, 2
      // Predicated region
      $region17: #{tpu_custom_call.1} parent=5 // pred_check
        %p131 = pneg %p130
      $region18: #{tpu_custom_call.1} parent=5 // pred_check_branch
        %133 = sbr.rel (%p131) target = $region20
      $region19: #{tpu_custom_call.1} parent=5 // pred_region
        // Predicated region
        $region21: #{tpu_custom_call.1} parent=19 // pred_check
          %p134 = pneg %p33
        $region22: #{tpu_custom_call.1} parent=19 // pred_check_branch
          %136 = sbr.rel (%p134) target = $region24
        $region23: #{tpu_custom_call.1} parent=19 // pred_region
          %p137 = scmp.lt.s32.totalorder %s13, 1
          %s138 = scalar_select %p137, %s13, 1
          %s139 = smul.addr %s138, 4
          %s140 = scalar_lea.vmem %s0, %s139
        $region24: #{tpu_custom_call.1} parent=19 // pred_fallthru
          _
      $region20: #{tpu_custom_call.1} parent=5 // pred_fallthru
        _
      %p141 = scmp.le.s32.totalorder 1, %s13
      %p142 = scmp.lt.s32.totalorder %s13, 3
      %p143 = pnand %p141, %p142
      %p144 = pneg %p143
      // Predicated region
      $region25: #{tpu_custom_call.1} parent=5 // pred_check
        _
      $region26: #{tpu_custom_call.1} parent=5 // pred_check_branch
        %146 = sbr.rel (%p143) target = $region28
      $region27: #{tpu_custom_call.1} parent=5 // pred_region
        %s147 = ssub.s32 %s13, 1
        %p148 = scmp.lt.s32.totalorder %s18, 1
        %s149 = scalar_select %p148, %s18, 1
        %s150 = smul.addr %s149, 4
        %s151 = scalar_lea.vmem %s0, %s150
        %p152 = pneg %p39
        %p153 = pneg %p36
        %p154 = pneg %p60
        %p155 = pneg %p57
        %p156 = pneg %p86
        %p157 = pneg %p83
        %p158 = scmp.lt.s32.totalorder %s18, 1
        %s159 = scalar_select %p158, %s18, 1
        %s160 = smul.addr %s159, 8
        %s161 = scalar_lea.vmem %s2, %s160
        %p162 = pneg %p112
        %p163 = pneg %p109
        %s164 = sand.u32 %s99, 1
        %s165 = scalar_lea.sflag [#allocation3], %s164
        %s166 = sand.u32 %s99, 1
        %s167 = smul.addr %s166, 8
        %s168 = scalar_lea.vmem [#allocation2], %s167
        %p169 = scmp.lt.s32.totalorder %s18, 1
        %s170 = scalar_select %p169, %s18, 1
        %s171 = smul.addr %s170, 4
        %s172 = scalar_lea.vmem %s0, %s171
        %p173 = scmp.lt.s32.totalorder %s18, 1
        %s174 = scalar_select %p173, %s18, 1
        %s175 = smul.addr %s174, 8
        %s176 = scalar_lea.vmem %s2, %s175
        %v178 = vld [vmem:[%s172] sm:$0xf]
        %v179 = vld [vmem:[%s1] sm:$0xf]
        %v180 = vld [vmem:[%s1 + $0x4] sm:$0xf]
        %v181 = vld [vmem:[%s1 + $0x8] sm:$0xf]
        %v182 = vld [vmem:[%s1 + $0xc] sm:$0xf]
        %v183 = vld [vmem:[%s1 + $0x10] sm:$0xf]
        %v184 = vld [vmem:[%s1 + $0x14] sm:$0xf]
        %v185 = vld [vmem:[%s1 + $0x18] sm:$0xf]
        %v186 = vld [vmem:[%s1 + $0x1c] sm:$0xf]
        %v187 = vld [vmem:[%s1 + $0x20] sm:$0xf]
        %v188 = vld [vmem:[%s1 + $0x24] sm:$0xf]
        %v189 = vld [vmem:[%s1 + $0x28] sm:$0xf]
        %v190 = vld [vmem:[%s1 + $0x2c] sm:$0xf]
        %v191 = vld [vmem:[%s1 + $0x30] sm:$0xf]
        %v192 = vld [vmem:[%s1 + $0x34] sm:$0xf]
        %v193 = vld [vmem:[%s1 + $0x38] sm:$0xf]
        %v194 = vld [vmem:[%s1 + $0x3c] sm:$0xf]
        %v211 = vunpack.c.l.b16 %v179
        %v212 = vunpack.c.l.b16 %v180
        %v213 = vunpack.c.l.b16 %v181
        %v214 = vunpack.c.l.b16 %v182
        %v215 = vunpack.c.l.b16 %v183
        %v216 = vunpack.c.l.b16 %v184
        %v217 = vunpack.c.l.b16 %v185
        %v218 = vunpack.c.l.b16 %v186
        %v219 = vunpack.c.l.b16 %v187
        %v220 = vunpack.c.l.b16 %v188
        %v221 = vunpack.c.l.b16 %v189
        %v222 = vunpack.c.l.b16 %v190
        %v223 = vunpack.c.l.b16 %v191
        %v224 = vunpack.c.l.b16 %v192
        %v225 = vunpack.c.l.b16 %v193
        %v226 = vunpack.c.l.b16 %v194
        %v227 = vpack.c.b16 %v212, %v211
        %v228 = vpack.c.b16 %v214, %v213
        %v229 = vpack.c.b16 %v216, %v215
        %v230 = vpack.c.b16 %v218, %v217
        %v231 = vpack.c.b16 %v220, %v219
        %v232 = vpack.c.b16 %v222, %v221
        %v233 = vpack.c.b16 %v224, %v223
        %v234 = vpack.c.b16 %v226, %v225
        %vm235 = vcmask 261120
        %v237 = vsel %vm235, %v178, 0
        %v240 = vsel %vm235, %v227, 0
        %v243 = vsel %vm235, %v228, 0
        %v246 = vsel %vm235, %v229, 0
        %v249 = vsel %vm235, %v230, 0
        %v252 = vsel %vm235, %v231, 0
        %v255 = vsel %vm235, %v232, 0
        %v258 = vsel %vm235, %v233, 0
        %v261 = vsel %vm235, %v234, 0
        %263 = vmatprep.subr.bf16.mxu0 0
        %264 = vmatpush1.bf16.xpose.msra.mxu0 %v261
        %265 = vmatprep.subr.bf16.mxu0 0
        %266 = vmatpush1.bf16.xpose.msra.mxu0 %v258
        %267 = vmatprep.subr.bf16.mxu0 0
        %268 = vmatpush1.bf16.xpose.msra.mxu0 %v255
        %269 = vmatprep.subr.bf16.mxu0 0
        %270 = vmatpush1.bf16.xpose.msra.mxu0 %v252
        %271 = vmatprep.subr.bf16.mxu0 0
        %272 = vmatpush1.bf16.xpose.msra.mxu0 %v249
        %273 = vmatprep.subr.bf16.mxu0 0
        %274 = vmatpush1.bf16.xpose.msra.mxu0 %v246
        %275 = vmatprep.subr.bf16.mxu0 0
        %276 = vmatpush1.bf16.xpose.msra.mxu0 %v243
        %277 = vmatprep.subr.bf16.mxu0 0
        %278 = vmatpush1.bf16.xpose.msra.mxu0 %v240
        %279 = vmatprep.subr.bf16.mxu0 0
        %280 = vmatpush2.bf16.xpose.msra.mxu0 0
        %281 = vmatprep.subr.bf16.mxu0 0
        %282 = vmatpush2.bf16.xpose.msra.mxu0 0
        %283 = vmatprep.subr.bf16.mxu0 0
        %284 = vmatpush2.bf16.xpose.msra.mxu0 0
        %285 = vmatprep.subr.bf16.mxu0 0
        %286 = vmatpush2.bf16.xpose.msra.mxu0 0
        %287 = vmatprep.subr.bf16.mxu0 0
        %288 = vmatpush2.bf16.xpose.msra.mxu0 0
        %289 = vmatprep.subr.bf16.mxu0 0
        %290 = vmatpush2.bf16.xpose.msra.mxu0 0
        %291 = vmatprep.subr.bf16.mxu0 0
        %292 = vmatpush2.bf16.xpose.msra.mxu0 0
        %293 = vmatprep.subr.bf16.mxu0 0
        %294 = vmatpush2.bf16.xpose.msra.mxu0 0
        %295 = vmatprep.mubr.bf16.mxu0 0
        %296 = vmatmul.mubr.bf16.gmra.mxu0 %v237
        %v297 = vpop.f32.mrf.mxu0
        %v298 = vadd.f32 0.0, %v297
        %v299 = vpop.f32.mrf.mxu0
        %v300 = vpop.f32.mrf.mxu0
        %v301 = vpop.f32.mrf.mxu0
        %302 = vdwg.mxu0
        %v303 = vmul.f32 %v298, 10.0
        %304 = vmax.xlane.f32.xlu0 %v303
        %v305 = vpop.xlane.xlu0 %304
        %v306 = vsub.f32 %v303, %v305
        %v307 = vmul.f32 %v306, 1.442695
        %v308 = vpow.pop %v307
        %309 = vadd.xlane.f32.xlu0 %v308
        %v310 = vpop.xlane.xlu0 %309
        %v311 = vrcp.pop %v310
        %v312 = vmul.f32 %v308, %v311
        %v313 = vlaneseq
        %v314 = vand.u32 %v313, 127
        %vm315 = vcmp.eq.f32.partialorder %v303, %v305
        %v316 = vsel %vm315, %v314, 128
        %v317 = vand.u32 %v316, 65535
        %v318 = vshra.s32 %v316, 16
        %v319 = vcvt.s32.f32 %v317
        %v320 = vcvt.s32.f32 %v318
        %321 = vmin.xlane.f32.xlu0 %v320
        %v322 = vpop.xlane.xlu0 %321
        %vm323 = vcmp.eq.f32.partialorder %v320, %v322
        %v324 = vsel %vm323, %v319, inf
        %325 = vmin.xlane.f32.xlu0 %v324
        %v326 = vpop.xlane.xlu0 %325
        %v327 = vcvt.f32.s32 %v326
        %v328 = vcvt.f32.s32 %v322
        %v329 = vshll.u32 %v328, 16
        %v330 = vadd.s32 %v329, %v327
        %vm331 = vcmask 7168
        %332 = vst.msk [vmem:[%s176] sm:$0xff] %vm331, %v330
        %333 = vst [vmem:[%s168] sm:$0xff] %v312
        %p334 = scmp.lt.s32.totalorder %s18, 1
        %s335 = scalar_select %p334, %s18, 1
        %s336 = smul.addr %s335, 8
        %s337 = scalar_lea.vmem %s2, %s336
        %s338 = sand.u32 %s99, 1
        %s339 = scalar_lea.sflag [#allocation3], %s338
        %s340 = sand.u32 %s99, 1
        %s341 = smul.addr %s340, 8
        %s342 = scalar_lea.vmem [#allocation2], %s341
        // Predicated region
        $region29: #{tpu_custom_call.1} parent=27 // pred_check
          %p343 = pneg %p83
        $region30: #{tpu_custom_call.1} parent=27 // pred_check_branch
          %345 = sbr.rel (%p343) target = $region32
        $region31: #{tpu_custom_call.1} parent=27 // pred_region
          _
        $region32: #{tpu_custom_call.1} parent=27 // pred_fallthru
          _
        // Predicated region
        $region33: #{tpu_custom_call.1} parent=27 // pred_check
          %p346 = pneg %p109
        $region34: #{tpu_custom_call.1} parent=27 // pred_check_branch
          %348 = sbr.rel (%p346) target = $region36
        $region35: #{tpu_custom_call.1} parent=27 // pred_region
          %s350 = ssub.s32 128, 128
          %351 = vsyncadd %s339, %s350
          %s352 = smul.addr %s18, 128
          %s353 = scalar_lea.hbm %s3, %s352
          %s355 = sshll.u32 %s342, 4
          %s356 = int_to_ptr.vmem [resolvable:$true] %s355
          %358 = dma.vmem_to_hbm [thread:$0]  %s356, 128, %s353, %s339
        $region36: #{tpu_custom_call.1} parent=27 // pred_fallthru
          _
      $region28: #{tpu_custom_call.1} parent=5 // pred_fallthru
        _
      %p359 = scmp.le.s32.totalorder 2, %s13
      // Predicated region
      $region37: #{tpu_custom_call.1} parent=5 // pred_check
        %p360 = pneg %p359
      $region38: #{tpu_custom_call.1} parent=5 // pred_check_branch
        %362 = sbr.rel (%p360) target = $region40
      $region39: #{tpu_custom_call.1} parent=5 // pred_region
        %s363 = ssub.s32 %s13, 2
        // Predicated region
        $region41: #{tpu_custom_call.1} parent=39 // pred_check
          %p364 = pneg %p89
        $region42: #{tpu_custom_call.1} parent=39 // pred_check_branch
          %366 = sbr.rel (%p364) target = $region44
        $region43: #{tpu_custom_call.1} parent=39 // pred_region
          %p367 = scmp.lt.s32.totalorder %s19, 1
          %s368 = scalar_select %p367, %s19, 1
          %s369 = smul.addr %s368, 8
          %s370 = scalar_lea.vmem %s2, %s369
        $region44: #{tpu_custom_call.1} parent=39 // pred_fallthru
          _
        // Predicated region
        $region45: #{tpu_custom_call.1} parent=39 // pred_check
          %p371 = pneg %p115
        $region46: #{tpu_custom_call.1} parent=39 // pred_check_branch
          %373 = sbr.rel (%p371) target = $region48
        $region47: #{tpu_custom_call.1} parent=39 // pred_region
          %s374 = sand.u32 %s100, 1
          %s375 = scalar_lea.sflag [#allocation3], %s374
          %s376 = sand.u32 %s100, 1
          %s377 = smul.addr %s376, 8
          %s378 = scalar_lea.vmem [#allocation2], %s377
          %379 = dma.done %s375, 128
        $region48: #{tpu_custom_call.1} parent=39 // pred_fallthru
          _
      $region40: #{tpu_custom_call.1} parent=5 // pred_fallthru
        _
    $region6: #{tpu_custom_call.1} parent=1 // loop_footer
      %s17 = sadd.s32 1, %s13
    $region7: #{tpu_custom_call.1} parent=1 // loop_footer_branch
      %12 = sbr.rel target = $region3
    $region8: #{tpu_custom_call.1} parent=1 // loop_exit
      _
    %380 = vsyncpa [#allocation3], 1
    %s381 = scalar_lea.sflag [#allocation3], 1
    %382 = vsyncpa %s381, 1

</llo_original>
